<compile_context>
chip_gen: v7x
topology: tpu7x:2x2x1
jax: 0.10.0
libtpu: 0.0.40
codegen_flags: <defaults>
</compile_context>

<pallas_src>
import math
from functools import partial

import jax
import jax.numpy as jnp
from jax.experimental import pallas as pl
from jax.experimental.pallas import tpu as pltpu

LANE = 128
SUBLANE = 8
VMEM_LIMIT = 32 * 1024 * 1024  # explicit scoped-VMEM limit (v5e default is 16 MiB)


def _cdiv(a, b):
    return -(-a // b)


def _round_up(x, m):
    return _cdiv(x, m) * m


def _pick_block_rows(rows, max_block=1024):
    """Largest multiple-of-8 divisor of `rows` that is <= max_block and (when
    possible) leaves >= 2 grid steps, so v7x's two TensorCores both get work
    and no padded rows are ever DMA'd (block always divides rows exactly)."""
    assert rows % SUBLANE == 0
    if rows <= SUBLANE:
        return rows
    target = min(max_block, max(SUBLANE, (rows // 2 // SUBLANE) * SUBLANE))
    best = SUBLANE
    for b in range(SUBLANE, target + 1, SUBLANE):
        if rows % b == 0:
            best = b
    return best


# ----------------------------------------------------------------------------
# Kernel 1 (fused): masked MC reduction + sum_zero subtract.
#   tensor_ref: (Rt, 128)  kernel values to normalize (padded, lane-dense)
#   gmc_ref:    (R, 128)   gaussian evaluated on the padded lane-dense MC points
#   mask_ref:   (R, 128)   precomputed inside-ball mask (static, f32 0/1)
#   out_ref:    (Rt, 128)  tensor - integral / n_samples
# ----------------------------------------------------------------------------
def _sum_zero_fused_kernel(tensor_ref, gmc_ref, mask_ref, out_ref, *, inv_n):
    integral = jnp.sum(gmc_ref[...] * mask_ref[...], keepdims=True)   # (1, 1)
    out_ref[...] = tensor_ref[...] - integral * inv_n


def sum_zero_fused(tensor_2d, gaussian_mc_2d, mask_2d, n_samples):
    # Single block, no grid: whole problem (~80 KB for S=10240) sits in VMEM.
    # TODO(synk): for very large tensors (K ≳ a few M f32 on v7x's 64 MiB
    # VMEM), tile the tensor rows with a grid and compute the MC integral once
    # (SMEM scratch guarded by pl.when on program_id==0) instead of per block.
    return pl.pallas_call(
        partial(_sum_zero_fused_kernel, inv_n=1.0 / float(n_samples)),
        out_shape=jax.ShapeDtypeStruct(tensor_2d.shape, jnp.float32),
        in_specs=[pl.BlockSpec(memory_space=pltpu.MemorySpace.VMEM),
                  pl.BlockSpec(memory_space=pltpu.MemorySpace.VMEM),
                  pl.BlockSpec(memory_space=pltpu.MemorySpace.VMEM)],
        out_specs=pl.BlockSpec(memory_space=pltpu.MemorySpace.VMEM),
        compiler_params=pltpu.CompilerParams(vmem_limit_bytes=VMEM_LIMIT),
    )(tensor_2d, gaussian_mc_2d, mask_2d)


# ----------------------------------------------------------------------------
# Kernel 2: rotate a lane-dense point cloud (3, R, 128) by a 3x3 matrix (VPU).
# ----------------------------------------------------------------------------
def _rotate_kernel(rot_ref, pts_ref, out_ref):
    # rot_ref: (3, 3) in SMEM (9 scalar reads, hoisted once per block);
    # pts_ref / out_ref: (3, Rblk, 128) in VMEM.
    x = pts_ref[0, :, :]
    y = pts_ref[1, :, :]
    z = pts_ref[2, :, :]
    r00 = rot_ref[0, 0]; r01 = rot_ref[0, 1]; r02 = rot_ref[0, 2]
    r10 = rot_ref[1, 0]; r11 = rot_ref[1, 1]; r12 = rot_ref[1, 2]
    r20 = rot_ref[2, 0]; r21 = rot_ref[2, 1]; r22 = rot_ref[2, 2]
    out_ref[0, :, :] = r00 * x + r01 * y + r02 * z
    out_ref[1, :, :] = r10 * x + r11 * y + r12 * z
    out_ref[2, :, :] = r20 * x + r21 * y + r22 * z


def rotate_points_pallas(rot, pts_3d, block_rows):
    _, rows, lanes = pts_3d.shape
    assert rows % block_rows == 0 and lanes == LANE
    grid = (rows // block_rows,)
    return pl.pallas_call(
        _rotate_kernel,
        out_shape=jax.ShapeDtypeStruct(pts_3d.shape, jnp.float32),
        grid=grid,
        in_specs=[pl.BlockSpec(memory_space=pltpu.MemorySpace.SMEM),
                  pl.BlockSpec((3, block_rows, LANE), lambda k: (0, k, 0))],
        out_specs=pl.BlockSpec((3, block_rows, LANE), lambda k: (0, k, 0)),
        compiler_params=pltpu.CompilerParams(
            dimension_semantics=("parallel",),
            vmem_limit_bytes=VMEM_LIMIT),
    )(rot, pts_3d)


# ----------------------------------------------------------------------------
# GIB_Stub equivalent
# ----------------------------------------------------------------------------
class GIBStubPallas:
    # Below this many points the pallas_call fixed cost + the (N,3)->(3,R,128)
    # layout copies dominate; plain XLA `points @ R.T` is faster (review rec).
    _PALLAS_ROTATE_MIN_POINTS = 4096

    def __init__(self, kernel_reach, angles=None, key=None):
        if key is None:
            key = jax.random.PRNGKey(0)
        k_sign, k_mc = jax.random.split(key)

        self.sign = 1 if float(jax.random.uniform(k_sign, ())) > 0.5 else -1
        self.angles = angles
        self.kernel_reach = float(kernel_reach)
        self.n_samples = 10000.0
        self.ndims = 3
        self.epsilon = 1e-8
        self.intensity = 1

        s = int(self.n_samples)
        mc = jax.random.uniform(k_mc, (s, self.ndims), dtype=jnp.float32)
        mc = mc * 2.0 * self.kernel_reach - self.kernel_reach        # (S, 3)

        # Lane-dense padded layout used by concrete GIBs to evaluate gaussian().
        rows = _round_up(_cdiv(s, LANE), SUBLANE)                    # 80
        s_pad = rows * LANE                                          # 10240
        # Padding points placed far outside the ball -> mask drops them
        # (replaces torch's dynamic-shape boolean filtering at init).
        pad = jnp.full((s_pad - s, self.ndims), 10.0 * self.kernel_reach,
                       jnp.float32)
        mc_full = jnp.concatenate([mc, pad], axis=0)                 # (S_pad, 3)
        self.mc_rows = rows
        self.mc_points_ld = mc_full.T.reshape(3, rows, LANE)         # (3, R, 128)

        # Static inside-ball mask, precomputed ONCE (no sqrt: compare sum of
        # squares to reach^2).  The fused sum_zero kernel consumes this instead
        # of re-DMAing and re-squaring the constant MC point array every call.
        r2 = jnp.sum(self.mc_points_ld * self.mc_points_ld, axis=0)  # (R, 128)
        self.mc_inside_ld = (r2 <= self.kernel_reach ** 2).astype(jnp.float32)

        # Parity with torch attribute: the filtered inside-ball points (eager,
        # init-time only; the Pallas path uses the padded layout + static mask
        # because TPU kernels need static shapes).
        inside = jnp.sum(mc * mc, axis=1) <= self.kernel_reach ** 2
        self.montecarlo_points = mc[inside]

    # --- abstract in the torch module --------------------------------------
    # TODO(synk): gaussian(), compute_integral() and forward() are abstract in
    # GIB_Stub and only defined in concrete GIB subclasses; not implemented.

    def _rotation_matrix(self):
        # torch: angles = self.angles % 2 ; angles = 2 - torch.relu(-angles).
        # After the modulo the angles are already in [0, 2); the second line is
        # only meaningful as a wrap of negatives (a no-op here).  Taken
        # literally it would force every rotation to 2*pi (identity), so the
        # intended wrap-to-[0, 2) semantics is used instead.
        a = jnp.mod(jnp.asarray(self.angles, jnp.float32), 2.0)
        rad = a * math.pi
        cx, sx = jnp.cos(rad[0]), jnp.sin(rad[0])
        cy, sy = jnp.cos(rad[1]), jnp.sin(rad[1])
        cz, sz = jnp.cos(rad[2]), jnp.sin(rad[2])
        rx = jnp.array([[1.0, 0.0, 0.0], [0.0, cx, -sx], [0.0, sx, cx]],
                       jnp.float32)
        ry = jnp.array([[cy, 0.0, sy], [0.0, 1.0, 0.0], [-sy, 0.0, cy]],
                       jnp.float32)
        rz = jnp.array([[cz, -sz, 0.0], [sz, cz, 0.0], [0.0, 0.0, 1.0]],
                       jnp.float32)
        # TODO(synk): rotate_points lives in an external module; Rz@Ry@Rx assumed.
        return (rz @ ry @ rx).astype(jnp.float32)

    def rotate_lane_dense(self, pts_3d):
        """Rotate a point cloud already kept in the persistent lane-dense
        (3, R, 128) layout (no per-call transpose / pad copies)."""
        if self.angles is None:
            return pts_3d
        rot = self._rotation_matrix()
        rows = pts_3d.shape[1]
        return rotate_points_pallas(rot, pts_3d, _pick_block_rows(rows))

    def rotate(self, points, use_pallas=None):
        """points: (N, 3) float32 -> rotated (N, 3)."""
        if self.angles is None:
            return points
        rot = self._rotation_matrix()
        points = points.astype(jnp.float32)
        n = points.shape[0]
        if use_pallas is None:
            use_pallas = n >= self._PALLAS_ROTATE_MIN_POINTS
        if not use_pallas:
            # Small/medium clouds: the rotation is HBM-bound (~0.3 flop/byte);
            # the Pallas launch + layout copies cost more than they save.
            return points @ rot.T

        rows = _round_up(_cdiv(n, LANE), SUBLANE)
        block_rows = _pick_block_rows(rows)        # divides rows exactly
        n_pad = rows * LANE
        pts_cm = jnp.zeros((3, n_pad), jnp.float32).at[:, :n].set(points.T)
        pts_3d = pts_cm.reshape(3, rows, LANE)
        out_3d = rotate_points_pallas(rot, pts_3d, block_rows)
        return out_3d.reshape(3, n_pad).T[:n]

    def sum_zero(self, tensor, gaussian_mc):
        """tensor: (K,) kernel values; gaussian_mc: (R, 128) gaussian evaluated
        on the padded lane-dense MC points (self.mc_points_ld).  The masked MC
        integral and the subtraction are fused in one kernel; the inside-ball
        mask is the static precomputed self.mc_inside_ld."""
        k = tensor.shape[0]
        k_pad = _round_up(k, SUBLANE * LANE)
        t = jnp.zeros((k_pad,), jnp.float32).at[:k].set(
            tensor.astype(jnp.float32))
        t2 = t.reshape(k_pad // LANE, LANE)
        out = sum_zero_fused(t2, gaussian_mc.astype(jnp.float32),
                             self.mc_inside_ld, self.n_samples)
        return out.reshape(-1)[:k]


if __name__ == "__main__":
    key = jax.random.PRNGKey(0)
    k_gib, k_pts = jax.random.split(key)

    kernel_reach = 1.0
    angles = jnp.zeros((3,), jnp.float32)   # as produced by gib_random_config
    gib = GIBStubPallas(kernel_reach, angles=angles, key=k_gib)

    # Example support point cloud (N, 3)
    pts = jax.random.uniform(k_pts, (200, 3), jnp.float32) * 2.0 - 1.0

    # Auto path (small N -> XLA) and forced-Pallas path (exercise the kernel).
    rotated = gib.rotate(pts)
    rotated_pallas = gib.rotate(pts, use_pallas=True)

    # Nonzero angles: check the Pallas rotation against the XLA reference.
    gib2 = GIBStubPallas(kernel_reach,
                         angles=jnp.array([0.5, 0.25, 1.0], jnp.float32),
                         key=k_gib)
    rot2 = gib2._rotation_matrix()
    rotated2_pallas = gib2.rotate(pts, use_pallas=True)

    # TODO(synk): gaussian()/compute_integral()/forward() are abstract; use a
    # simple isotropic exp(-||p||^2) stand-in to exercise the fused kernel.
    g_mc = jnp.exp(-jnp.sum(gib.mc_points_ld ** 2, axis=0))   # (R, 128)
    tensor = jnp.exp(-jnp.sum(pts * pts, axis=1))             # (200,)

    out = gib.sum_zero(tensor, g_mc)
    jax.block_until_ready((rotated, rotated_pallas, rotated2_pallas, out))

    # --- reference checks (plain JAX) ---------------------------------------
    assert rotated.shape == (200, 3) and rotated_pallas.shape == (200, 3)
    assert out.shape == (200,)
    # angles == 0 -> identity rotation (both paths)
    assert jnp.allclose(rotated, pts, atol=1e-5)
    assert jnp.allclose(rotated_pallas, pts, atol=1e-5)
    # nonzero angles: Pallas kernel matches points @ R^T
    assert jnp.allclose(rotated2_pallas, pts @ rot2.T, atol=1e-5)
    # fused sum_zero matches the masked-integral reference
    mask_ref = (jnp.sum(gib.mc_points_ld ** 2, axis=0)
                <= kernel_reach ** 2).astype(jnp.float32)
    integral_ref = jnp.sum(g_mc * mask_ref)
    out_ref = tensor - integral_ref / gib.n_samples
    assert jnp.allclose(out, out_ref, atol=1e-4)

    print("KERNEL_OK")
</pallas_src>

<mosaic_0001>
module attributes {stable_mosaic.version = 11 : i64} {
  func.func @_rotate_kernel(%arg0: i32, %arg1: memref<3x3xf32, #tpu.memory_space<smem>>, %arg2: memref<3x8x128xf32, #tpu.memory_space<vmem>>, %arg3: memref<3x8x128xf32, #tpu.memory_space<vmem>>) attributes {dimension_semantics = [#tpu.dimension_semantics<parallel>], iteration_bounds = array<i64: 1>, scalar_prefetch = 0 : i64, scratch_operands = 0 : i64, tpu.core_type = #tpu.core_type<tc>, window_params = [{transform_indices = @transform_0, window_bounds = array<i64: 3, 3>}, {transform_indices = @transform_1, window_bounds = array<i64: 3, 8, 128>}, {transform_indices = @transform_2, window_bounds = array<i64: 3, 8, 128>}]} {
    %c0 = arith.constant 0 : index
    %c0_0 = arith.constant 0 : index
    %c0_1 = arith.constant 0 : index
    %0 = vector.load %arg2[%c0, %c0_0, %c0_1] : memref<3x8x128xf32, #tpu.memory_space<vmem>>, vector<1x8x128xf32>
    %1 = vector.shape_cast %0 : vector<1x8x128xf32> to vector<8x128xf32>
    %c1 = arith.constant 1 : index
    %c0_2 = arith.constant 0 : index
    %c0_3 = arith.constant 0 : index
    %2 = vector.load %arg2[%c1, %c0_2, %c0_3] : memref<3x8x128xf32, #tpu.memory_space<vmem>>, vector<1x8x128xf32>
    %3 = vector.shape_cast %2 : vector<1x8x128xf32> to vector<8x128xf32>
    %c2 = arith.constant 2 : index
    %c0_4 = arith.constant 0 : index
    %c0_5 = arith.constant 0 : index
    %4 = vector.load %arg2[%c2, %c0_4, %c0_5] : memref<3x8x128xf32, #tpu.memory_space<vmem>>, vector<1x8x128xf32>
    %5 = vector.shape_cast %4 : vector<1x8x128xf32> to vector<8x128xf32>
    %c0_6 = arith.constant 0 : index
    %c0_7 = arith.constant 0 : index
    %6 = memref.load %arg1[%c0_6, %c0_7] : memref<3x3xf32, #tpu.memory_space<smem>>
    %c0_8 = arith.constant 0 : index
    %c1_9 = arith.constant 1 : index
    %7 = memref.load %arg1[%c0_8, %c1_9] : memref<3x3xf32, #tpu.memory_space<smem>>
    %c0_10 = arith.constant 0 : index
    %c2_11 = arith.constant 2 : index
    %8 = memref.load %arg1[%c0_10, %c2_11] : memref<3x3xf32, #tpu.memory_space<smem>>
    %c1_12 = arith.constant 1 : index
    %c0_13 = arith.constant 0 : index
    %9 = memref.load %arg1[%c1_12, %c0_13] : memref<3x3xf32, #tpu.memory_space<smem>>
    %c1_14 = arith.constant 1 : index
    %c1_15 = arith.constant 1 : index
    %10 = memref.load %arg1[%c1_14, %c1_15] : memref<3x3xf32, #tpu.memory_space<smem>>
    %c1_16 = arith.constant 1 : index
    %c2_17 = arith.constant 2 : index
    %11 = memref.load %arg1[%c1_16, %c2_17] : memref<3x3xf32, #tpu.memory_space<smem>>
    %c2_18 = arith.constant 2 : index
    %c0_19 = arith.constant 0 : index
    %12 = memref.load %arg1[%c2_18, %c0_19] : memref<3x3xf32, #tpu.memory_space<smem>>
    %c2_20 = arith.constant 2 : index
    %c1_21 = arith.constant 1 : index
    %13 = memref.load %arg1[%c2_20, %c1_21] : memref<3x3xf32, #tpu.memory_space<smem>>
    %c2_22 = arith.constant 2 : index
    %c2_23 = arith.constant 2 : index
    %14 = memref.load %arg1[%c2_22, %c2_23] : memref<3x3xf32, #tpu.memory_space<smem>>
    %15 = vector.broadcast %6 : f32 to vector<8x128xf32>
    %16 = arith.mulf %15, %1 : vector<8x128xf32>
    %17 = vector.broadcast %7 : f32 to vector<8x128xf32>
    %18 = arith.mulf %17, %3 : vector<8x128xf32>
    %19 = arith.addf %16, %18 : vector<8x128xf32>
    %20 = vector.broadcast %8 : f32 to vector<8x128xf32>
    %21 = arith.mulf %20, %5 : vector<8x128xf32>
    %22 = arith.addf %19, %21 : vector<8x128xf32>
    %c0_24 = arith.constant 0 : index
    %c0_25 = arith.constant 0 : index
    %c0_26 = arith.constant 0 : index
    %23 = vector.load %arg3[%c0_24, %c0_25, %c0_26] : memref<3x8x128xf32, #tpu.memory_space<vmem>>, vector<1x8x128xf32>
    %24 = vector.shape_cast %23 : vector<1x8x128xf32> to vector<8x128xf32>
    %25 = vector.shape_cast %22 : vector<8x128xf32> to vector<1x8x128xf32>
    tpu.vector_store %arg3[%c0_24, %c0_25, %c0_26], %25 {strides = array<i32>} : memref<3x8x128xf32, #tpu.memory_space<vmem>>, vector<1x8x128xf32>,
    %26 = vector.broadcast %9 : f32 to vector<8x128xf32>
    %27 = arith.mulf %26, %1 : vector<8x128xf32>
    %28 = vector.broadcast %10 : f32 to vector<8x128xf32>
    %29 = arith.mulf %28, %3 : vector<8x128xf32>
    %30 = arith.addf %27, %29 : vector<8x128xf32>
    %31 = vector.broadcast %11 : f32 to vector<8x128xf32>
    %32 = arith.mulf %31, %5 : vector<8x128xf32>
    %33 = arith.addf %30, %32 : vector<8x128xf32>
    %c1_27 = arith.constant 1 : index
    %c0_28 = arith.constant 0 : index
    %c0_29 = arith.constant 0 : index
    %34 = vector.load %arg3[%c1_27, %c0_28, %c0_29] : memref<3x8x128xf32, #tpu.memory_space<vmem>>, vector<1x8x128xf32>
    %35 = vector.shape_cast %34 : vector<1x8x128xf32> to vector<8x128xf32>
    %36 = vector.shape_cast %33 : vector<8x128xf32> to vector<1x8x128xf32>
    tpu.vector_store %arg3[%c1_27, %c0_28, %c0_29], %36 {strides = array<i32>} : memref<3x8x128xf32, #tpu.memory_space<vmem>>, vector<1x8x128xf32>,
    %37 = vector.broadcast %12 : f32 to vector<8x128xf32>
    %38 = arith.mulf %37, %1 : vector<8x128xf32>
    %39 = vector.broadcast %13 : f32 to vector<8x128xf32>
    %40 = arith.mulf %39, %3 : vector<8x128xf32>
    %41 = arith.addf %38, %40 : vector<8x128xf32>
    %42 = vector.broadcast %14 : f32 to vector<8x128xf32>
    %43 = arith.mulf %42, %5 : vector<8x128xf32>
    %44 = arith.addf %41, %43 : vector<8x128xf32>
    %c2_30 = arith.constant 2 : index
    %c0_31 = arith.constant 0 : index
    %c0_32 = arith.constant 0 : index
    %45 = vector.load %arg3[%c2_30, %c0_31, %c0_32] : memref<3x8x128xf32, #tpu.memory_space<vmem>>, vector<1x8x128xf32>
    %46 = vector.shape_cast %45 : vector<1x8x128xf32> to vector<8x128xf32>
    %47 = vector.shape_cast %44 : vector<8x128xf32> to vector<1x8x128xf32>
    tpu.vector_store %arg3[%c2_30, %c0_31, %c0_32], %47 {strides = array<i32>} : memref<3x8x128xf32, #tpu.memory_space<vmem>>, vector<1x8x128xf32>,
    return
  }
  func.func @transform_0(%arg0: i32) -> (i32, i32) {
    %c0_i32 = arith.constant 0 : i32
    %c0_i32_0 = arith.constant 0 : i32
    %c0_i32_1 = arith.constant 0 : i32
    return %c0_i32, %c0_i32_0 : i32, i32
  }
  func.func @transform_1(%arg0: i32) -> (i32, i32, i32) {
    %c0_i32 = arith.constant 0 : i32
    %c0_i32_0 = arith.constant 0 : i32
    %c0_i32_1 = arith.constant 0 : i32
    return %c0_i32, %arg0, %c0_i32_0 : i32, i32, i32
  }
  func.func @transform_2(%arg0: i32) -> (i32, i32, i32) {
    %c0_i32 = arith.constant 0 : i32
    %c0_i32_0 = arith.constant 0 : i32
    %c0_i32_1 = arith.constant 0 : i32
    return %c0_i32, %arg0, %c0_i32_0 : i32, i32, i32
  }
}

</mosaic_0001>

<llo_original>
// kernel: tpu_custom_call.1
$region0: #{tpu_custom_call.1}
  #allocation0 [shape = 'u32[]', space=smem, size = 0x4, offset = 0x4, fixed_abs, tag = 'smem constant byte address 0x4 - core index']
  #allocation1 [shape = 'u32[144,128]{1,0:T(1,128)}', space=vmem, size = 0x12000, scoped, tag = 'internal scratch']
  %s0 = inlined_call_operand.hbm [shape: f32[3,3], index: 0, kind: input, shape index: {}]
  %s1 = inlined_call_operand.hbm [shape: f32[3,8,128], index: 1, kind: input, shape index: {}]
  %s2 = inlined_call_operand.hbm [shape: f32[3,8,128], index: 2, kind: output, shape index: {}]
  %s3 = sld [smem:[#allocation0]]
  $region26: #{tpu_custom_call.1} parent=0
    _
  %s5 = ssub.s32 1, %s3
  %s6 = scalar_select 0, %s5, %s3
  $region1: #{tpu_custom_call.1} parent=0
    #allocation2 [shape = 'u8[2048]{0}', space=smem, size = 0x800, scoped, tag = 'input window, operand 0, single buffered']
    #allocation3 [shape = 's32[1]{0}', space=sflag, size = 0x4, scoped, tag = 'scoped memory for tpu_custom_call.1']
    #allocation4 [shape = 's32[1]{0}', space=sflag, size = 0x4, scoped, tag = 'scoped memory for tpu_custom_call.1']
    #allocation5 [shape = 's32[1]{0}', space=sflag, size = 0x4, scoped, tag = 'scoped memory for tpu_custom_call.1']
    #allocation6 [shape = 'u8[12288]{0}', space=vmem, size = 0x3000, scoped, tag = 'input window, operand 1, single buffered']
    #allocation7 [shape = 'u8[12288]{0}', space=vmem, size = 0x3000, scoped, tag = 'output window, operand 0, single buffered']
    %7 = vsyncpa [#allocation5], 0
    %8 = vsyncpa [#allocation3], 0
    %9 = vsyncpa [#allocation4], 0
    // Predicated region
    $region2: #{tpu_custom_call.1} parent=1 // pred_check
      _
    $region3: #{tpu_custom_call.1} parent=1 // pred_check_branch
      %11 = sbr.rel (0) target = $region5
    $region4: #{tpu_custom_call.1} parent=1 // pred_region
      %s13 = ssub.s32 64, 64
      %14 = vsyncadd [#allocation5], %s13
      %17 = dma.hbm_to_smem %s0, 64, [#allocation2], [#allocation5]
    $region5: #{tpu_custom_call.1} parent=1 // pred_fallthru
      _
    // Predicated region
    $region6: #{tpu_custom_call.1} parent=1 // pred_check
      _
    $region7: #{tpu_custom_call.1} parent=1 // pred_check_branch
      %19 = sbr.rel (0) target = $region9
    $region8: #{tpu_custom_call.1} parent=1 // pred_region
      %s21 = ssub.s32 384, 384
      %22 = vsyncadd [#allocation3], %s21
      %s23 = sshll.u32 [#allocation6], 4
      %s24 = int_to_ptr.vmem [resolvable:$true] %s23
      %29 = dma.hbm_to_vmem [thread:$0]  %s1, 384, %s24, [#allocation3], 128, 128, 8
    $region9: #{tpu_custom_call.1} parent=1 // pred_fallthru
      _
    // Predicated region
    $region10: #{tpu_custom_call.1} parent=1 // pred_check
      _
    $region11: #{tpu_custom_call.1} parent=1 // pred_check_branch
      %31 = sbr.rel (0) target = $region13
    $region12: #{tpu_custom_call.1} parent=1 // pred_region
      %32 = dma.done [#allocation5], 64
    $region13: #{tpu_custom_call.1} parent=1 // pred_fallthru
      _
    // Predicated region
    $region14: #{tpu_custom_call.1} parent=1 // pred_check
      _
    $region15: #{tpu_custom_call.1} parent=1 // pred_check_branch
      %34 = sbr.rel (0) target = $region17
    $region16: #{tpu_custom_call.1} parent=1 // pred_region
      %35 = dma.done [#allocation3], 384
    $region17: #{tpu_custom_call.1} parent=1 // pred_fallthru
      _
    %36 = sfence
    %v37 = vld [vmem:[#allocation6] sm:$0xff]
    %s38 = scalar_lea.vmem [#allocation6], 8
    %v39 = vld [vmem:[%s38] sm:$0xff]
    %s40 = scalar_lea.vmem [#allocation6], 16
    %v41 = vld [vmem:[%s40] sm:$0xff]
    %s42 = sld [smem:[#allocation2]]
    %s43 = sld [smem:[#allocation2 + $0x1]]
    %s44 = sld [smem:[#allocation2 + $0x2]]
    %s45 = sld [smem:[#allocation2 + $0x80]]
    %s46 = sld [smem:[#allocation2 + $0x81]]
    %s47 = sld [smem:[#allocation2 + $0x82]]
    %s48 = sld [smem:[#allocation2 + $0x100]]
    %s49 = sld [smem:[#allocation2 + $0x101]]
    %s50 = sld [smem:[#allocation2 + $0x102]]
    %v51 = vstv %s42
    %v52 = vmul.f32 %v51, %v37
    %v53 = vstv %s43
    %v54 = vmul.f32 %v53, %v39
    %v55 = vadd.f32 %v52, %v54
    %v56 = vstv %s44
    %v57 = vmul.f32 %v56, %v41
    %v58 = vadd.f32 %v55, %v57
    %59 = vst [vmem:[#allocation7] sm:$0xff] %v58
    %v60 = vstv %s45
    %v61 = vmul.f32 %v60, %v37
    %v62 = vstv %s46
    %v63 = vmul.f32 %v62, %v39
    %v64 = vadd.f32 %v61, %v63
    %v65 = vstv %s47
    %v66 = vmul.f32 %v65, %v41
    %v67 = vadd.f32 %v64, %v66
    %s68 = scalar_lea.vmem [#allocation7], 8
    %69 = vst [vmem:[%s68] sm:$0xff] %v67
    %v70 = vstv %s48
    %v71 = vmul.f32 %v70, %v37
    %v72 = vstv %s49
    %v73 = vmul.f32 %v72, %v39
    %v74 = vadd.f32 %v71, %v73
    %v75 = vstv %s50
    %v76 = vmul.f32 %v75, %v41
    %v77 = vadd.f32 %v74, %v76
    %s78 = scalar_lea.vmem [#allocation7], 16
    %79 = vst [vmem:[%s78] sm:$0xff] %v77
    // Predicated region
    $region18: #{tpu_custom_call.1} parent=1 // pred_check
      _
    $region19: #{tpu_custom_call.1} parent=1 // pred_check_branch
      %81 = sbr.rel (0) target = $region21
    $region20: #{tpu_custom_call.1} parent=1 // pred_region
      %s83 = ssub.s32 384, 384
      %84 = vsyncadd [#allocation4], %s83
      %s85 = sshll.u32 [#allocation7], 4
      %s86 = int_to_ptr.vmem [resolvable:$true] %s85
      %91 = dma.vmem_to_hbm [thread:$0]  %s86, 384, %s2, [#allocation4], 128, 128, 8
    $region21: #{tpu_custom_call.1} parent=1 // pred_fallthru
      _
    // Predicated region
    $region22: #{tpu_custom_call.1} parent=1 // pred_check
      _
    $region23: #{tpu_custom_call.1} parent=1 // pred_check_branch
      %93 = sbr.rel (0) target = $region25
    $region24: #{tpu_custom_call.1} parent=1 // pred_region
      %94 = dma.done [#allocation4], 384
    $region25: #{tpu_custom_call.1} parent=1 // pred_fallthru
      _
    %95 = vsyncpa [#allocation3], 1
    %96 = vsyncpa [#allocation4], 1
    %97 = vsyncpa [#allocation5], 1

</llo_original>
